<compile_context>
chip_gen: v5e
topology: v5e:2x2
jax: 0.10.0
libtpu: 0.0.40
codegen_flags: <defaults>
</compile_context>

<pallas_src>
import jax
import jax.numpy as jnp
from jax.experimental import pallas as pl
from jax.experimental.pallas import tpu as pltpu


# --------------------------------------------------------------------------
# Kernel
# --------------------------------------------------------------------------
def qa_model_kernel(q_ref, s_ref,
                    w1q_ref, w1s_ref, b1_ref,
                    w2_ref, b2_ref,
                    wc1_ref, bc1_ref,
                    wc2_ref, bc2_ref,
                    out_ref):
    f32 = jnp.float32

    # Encoder-1: QEnc1 on q plus block-diagonal SEnc1 on all N sentences,
    # summed into one (tile_b, (1+N)*hid1) slab.  Bias + ReLU in f32.
    h1 = (jnp.dot(q_ref[...], w1q_ref[...], preferred_element_type=f32)
          + jnp.dot(s_ref[...], w1s_ref[...], preferred_element_type=f32)
          + b1_ref[...])
    h1 = jnp.maximum(h1, 0.0)

    # Encoder-2: block-diagonal QEnc2/SEnc2 (no ReLU afterwards, per module).
    h2 = jnp.dot(h1.astype(w2_ref.dtype), w2_ref[...],
                 preferred_element_type=f32) + b2_ref[...]

    # Classifier1: h2's feature order IS torch.cat((q2, s2.view(B,-1)), 1),
    # so this is the literal concat matmul.  ReLU in f32.
    h3 = jnp.maximum(
        jnp.dot(h2.astype(wc1_ref.dtype), wc1_ref[...],
                preferred_element_type=f32) + bc1_ref[...], 0.0)

    # Classifier2: weight columns are zero-padded to a multiple of 128 so this
    # store is lane-dense (unmasked vst); the wrapper slices [:, :N].
    out_ref[...] = (jnp.dot(h3.astype(wc2_ref.dtype), wc2_ref[...],
                            preferred_element_type=f32)
                    + bc2_ref[...]).astype(out_ref.dtype)


# --------------------------------------------------------------------------
# One-time weight preparation (OFF the per-call path)
# --------------------------------------------------------------------------
def _block_diag(blocks):
    rows = sum(b.shape[0] for b in blocks)
    cols = sum(b.shape[1] for b in blocks)
    out = jnp.zeros((rows, cols), blocks[0].dtype)
    r = c = 0
    for b in blocks:
        out = out.at[r:r + b.shape[0], c:c + b.shape[1]].set(b)
        r += b.shape[0]
        c += b.shape[1]
    return out


def prepare_params(params, *, compute_dtype=jnp.float32):
    """Build block-diagonal / padded weights once.

    compute_dtype: dtype of MXU inputs (weights + streamed activations).
    Biases stay f32 so bias-add / ReLU run in the f32 accumulator.
    """
    N = params["Classifier2_w"].shape[0]          # num_sentence
    hid1 = params["QEnc1_w"].shape[0]

    wq1t = params["QEnc1_w"].T                    # (w2v, hid1)
    ws1t = params["SEnc1_w"].T                    # (w2v, hid1)
    wq2t = params["QEnc2_w"].T                    # (hid1, hid2)
    ws2t = params["SEnc2_w"].T                    # (hid1, hid2)

    # Encoder-1, split into a q part and a block-diagonal sentence part so the
    # wrapper never materialises concat([q, s_flat]) in HBM.
    w1q = jnp.pad(wq1t, ((0, 0), (0, N * hid1)))                 # (w2v, (1+N)*hid1)
    w1s = jnp.pad(_block_diag([ws1t] * N), ((0, 0), (hid1, 0)))  # (N*w2v, (1+N)*hid1)
    b1 = jnp.concatenate([params["QEnc1_b"]] + [params["SEnc1_b"]] * N)[None, :]

    # Encoder-2: one block-diagonal matmul over the combined feature axis.
    w2 = _block_diag([wq2t] + [ws2t] * N)                        # ((1+N)*hid1, (1+N)*hid2)
    b2 = jnp.concatenate([params["QEnc2_b"]] + [params["SEnc2_b"]] * N)[None, :]

    # Classifier1: feature order of h2 matches the torch concat exactly.
    wc1 = params["Classifier1_w"].T                              # ((1+N)*hid2, hid3)
    bc1 = params["Classifier1_b"][None, :]

    # Classifier2, output padded to a lane-dense multiple of 128.
    n_pad = max(128, ((N + 127) // 128) * 128)
    wc2 = jnp.pad(params["Classifier2_w"].T, ((0, 0), (0, n_pad - N)))  # (hid3, n_pad)
    bc2 = jnp.pad(params["Classifier2_b"], (0, n_pad - N))[None, :]

    cd = compute_dtype
    return dict(
        w1q=w1q.astype(cd), w1s=w1s.astype(cd), b1=b1.astype(jnp.float32),
        w2=w2.astype(cd), b2=b2.astype(jnp.float32),
        wc1=wc1.astype(cd), bc1=bc1.astype(jnp.float32),
        wc2=wc2.astype(cd), bc2=bc2.astype(jnp.float32),
    )


_WEIGHT_ORDER = ("w1q", "w1s", "b1", "w2", "b2", "wc1", "bc1", "wc2", "bc2")


def _pick_tile_b(B):
    # Small B: single grid step (zero pipeline overhead, grid=1).
    # Production B: cap tiles so q/s/out double-buffers + weights stay far
    # below the v7x 32 MiB scoped-VMEM default while keeping >= 2 parallel
    # grid steps so both v7x TensorCores get batch tiles (harmless on the
    # single-TC v5e/v6e, where the grid is just a serial loop).
    if B <= 256:
        return B
    for cand in (512, 256, 128, 64, 32, 16, 8):
        if cand < B and B % cand == 0:
            return cand
    return B


# --------------------------------------------------------------------------
# Wrapper
# --------------------------------------------------------------------------
def qa_model1_pallas(q, s, prepped, *, tile_b=None):
    B, w2v = q.shape
    N = s.shape[1]
    n_pad = prepped["wc2"].shape[1]
    cd = prepped["w1q"].dtype

    if tile_b is None:
        tile_b = _pick_tile_b(B)
    if tile_b >= B:
        tile_b = B
    # Ragged batches unsupported: B must be tileable (pad B upstream if not).
    assert B % tile_b == 0 and (tile_b == B or tile_b % 8 == 0), (
        "batch tile must divide B and be sublane (8) aligned")

    # Free row-major reshape (no transpose, no extra HBM copy of s).
    s_flat = s.reshape(B, N * w2v).astype(cd)
    q_in = q.astype(cd)

    weights = [prepped[k] for k in _WEIGHT_ORDER]
    # Grid-invariant weights: at these sizes the double-buffered footprint is
    # < 1 MiB, so the dead second buffer is left alone.  At larger hidden dims
    # single-buffer them (pipeline_mode=pl.Buffered(1)) or stage into VMEM
    # scratch — matters first under v7x's 32 MiB scoped-VMEM default.
    weight_specs = [
        pl.BlockSpec(w.shape, lambda i, nd=w.ndim: (0,) * nd) for w in weights
    ]

    in_specs = [
        pl.BlockSpec((tile_b, w2v), lambda i: (i, 0)),         # q
        pl.BlockSpec((tile_b, N * w2v), lambda i: (i, 0)),     # s flattened
    ] + weight_specs
    out_spec = pl.BlockSpec((tile_b, n_pad), lambda i: (i, 0))

    out_padded = pl.pallas_call(
        qa_model_kernel,
        out_shape=jax.ShapeDtypeStruct((B, n_pad), jnp.float32),
        grid_spec=pltpu.PrefetchScalarGridSpec(
            num_scalar_prefetch=0,
            grid=(B // tile_b,),
            in_specs=in_specs,
            out_specs=out_spec,
        ),
        # Batch axis is embarrassingly parallel -> shardable across v7x's 2 TCs.
        compiler_params=pltpu.CompilerParams(
            dimension_semantics=("parallel",)),
    )(q_in, s_flat, *weights)

    return out_padded[:, :N]


# --------------------------------------------------------------------------
# Pure-JAX reference (mirrors the PyTorch forward exactly)
# --------------------------------------------------------------------------
def qa_model1_ref(q, s, params):
    B = q.shape[0]

    def lin(x, w, b):
        return x @ w.T + b

    qh = jax.nn.relu(lin(q, params["QEnc1_w"], params["QEnc1_b"]))
    q2 = lin(qh, params["QEnc2_w"], params["QEnc2_b"])
    sh = jax.nn.relu(lin(s, params["SEnc1_w"], params["SEnc1_b"]))
    s2 = lin(sh, params["SEnc2_w"], params["SEnc2_b"])
    x = jnp.concatenate([q2, s2.reshape(B, -1)], axis=1)
    x = jax.nn.relu(lin(x, params["Classifier1_w"], params["Classifier1_b"]))
    return lin(x, params["Classifier2_w"], params["Classifier2_b"])


def init_linear(key, in_dim, out_dim):
    kw, kb = jax.random.split(key)
    bound = 1.0 / (in_dim ** 0.5)
    w = jax.random.uniform(kw, (out_dim, in_dim), jnp.float32, -bound, bound)
    b = jax.random.uniform(kb, (out_dim,), jnp.float32, -bound, bound)
    return w, b


if __name__ == "__main__":
    w2v_dim, hid1, hid2, num_sentence, hid3 = 32, 64, 32, 4, 64

    key = jax.random.PRNGKey(0)
    keys = jax.random.split(key, 8)

    params = {}
    params["QEnc1_w"], params["QEnc1_b"] = init_linear(keys[0], w2v_dim, hid1)
    params["QEnc2_w"], params["QEnc2_b"] = init_linear(keys[1], hid1, hid2)
    params["SEnc1_w"], params["SEnc1_b"] = init_linear(keys[2], w2v_dim, hid1)
    params["SEnc2_w"], params["SEnc2_b"] = init_linear(keys[3], hid1, hid2)
    params["Classifier1_w"], params["Classifier1_b"] = init_linear(
        keys[4], hid2 * (1 + num_sentence), hid3)
    params["Classifier2_w"], params["Classifier2_b"] = init_linear(
        keys[5], hid3, num_sentence)

    # ---- Config 1: B=16, auto tile (grid=1), f32 weights ----
    B = 16
    q = jax.random.normal(keys[6], (B, w2v_dim), jnp.float32)
    s = jax.random.normal(keys[7], (B, num_sentence, w2v_dim), jnp.float32)
    ref = qa_model1_ref(q, s, params)

    prepped_f32 = prepare_params(params, compute_dtype=jnp.float32)
    out = jax.block_until_ready(qa_model1_pallas(q, s, prepped_f32))
    assert out.shape == (B, num_sentence)
    assert jnp.allclose(out, ref, atol=1e-4, rtol=1e-4), "f32 single-tile mismatch"

    # ---- Config 2: multi-step parallel batch grid (B=32, tile_b=8), f32 ----
    B2 = 32
    q2 = jax.random.normal(jax.random.PRNGKey(1), (B2, w2v_dim), jnp.float32)
    s2 = jax.random.normal(jax.random.PRNGKey(2),
                           (B2, num_sentence, w2v_dim), jnp.float32)
    out2 = jax.block_until_ready(qa_model1_pallas(q2, s2, prepped_f32, tile_b=8))
    ref2 = qa_model1_ref(q2, s2, params)
    assert jnp.allclose(out2, ref2, atol=1e-4, rtol=1e-4), "f32 multi-tile mismatch"

    # ---- Config 3: bf16 weights/activations, f32 accumulation ----
    prepped_bf16 = prepare_params(params, compute_dtype=jnp.bfloat16)
    out_bf16 = jax.block_until_ready(qa_model1_pallas(q, s, prepped_bf16))
    assert out_bf16.shape == (B, num_sentence)
    assert jnp.allclose(out_bf16, ref, atol=5e-2, rtol=5e-2), "bf16 path mismatch"

    print("KERNEL_OK")
</pallas_src>

<mosaic_0001>
module attributes {stable_mosaic.version = 11 : i64} {
  func.func @qa_model_kernel(%arg0: i32, %arg1: memref<16x32xf32, #tpu.memory_space<vmem>>, %arg2: memref<16x128xf32, #tpu.memory_space<vmem>>, %arg3: memref<32x320xf32, #tpu.memory_space<vmem>>, %arg4: memref<128x320xf32, #tpu.memory_space<vmem>>, %arg5: memref<1x320xf32, #tpu.memory_space<vmem>>, %arg6: memref<320x160xf32, #tpu.memory_space<vmem>>, %arg7: memref<1x160xf32, #tpu.memory_space<vmem>>, %arg8: memref<160x64xf32, #tpu.memory_space<vmem>>, %arg9: memref<1x64xf32, #tpu.memory_space<vmem>>, %arg10: memref<64x128xf32, #tpu.memory_space<vmem>>, %arg11: memref<1x128xf32, #tpu.memory_space<vmem>>, %arg12: memref<16x128xf32, #tpu.memory_space<vmem>>) attributes {dimension_semantics = [#tpu.dimension_semantics<parallel>], iteration_bounds = array<i64: 1>, scalar_prefetch = 0 : i64, scratch_operands = 0 : i64, tpu.core_type = #tpu.core_type<tc>, window_params = [{transform_indices = @transform_0, window_bounds = array<i64: 16, 32>}, {transform_indices = @transform_1, window_bounds = array<i64: 16, 128>}, {pipeline_mode = #tpu.pipeline_mode<synchronous>, transform_indices = @transform_2, window_bounds = array<i64: 32, 320>}, {pipeline_mode = #tpu.pipeline_mode<synchronous>, transform_indices = @transform_3, window_bounds = array<i64: 128, 320>}, {pipeline_mode = #tpu.pipeline_mode<synchronous>, transform_indices = @transform_4, window_bounds = array<i64: 1, 320>}, {pipeline_mode = #tpu.pipeline_mode<synchronous>, transform_indices = @transform_5, window_bounds = array<i64: 320, 160>}, {pipeline_mode = #tpu.pipeline_mode<synchronous>, transform_indices = @transform_6, window_bounds = array<i64: 1, 160>}, {pipeline_mode = #tpu.pipeline_mode<synchronous>, transform_indices = @transform_7, window_bounds = array<i64: 160, 64>}, {pipeline_mode = #tpu.pipeline_mode<synchronous>, transform_indices = @transform_8, window_bounds = array<i64: 1, 64>}, {pipeline_mode = #tpu.pipeline_mode<synchronous>, transform_indices = @transform_9, window_bounds = array<i64: 64, 128>}, {pipeline_mode = #tpu.pipeline_mode<synchronous>, transform_indices = @transform_10, window_bounds = array<i64: 1, 128>}, {transform_indices = @transform_11, window_bounds = array<i64: 16, 128>}]} {
    %c0 = arith.constant 0 : index
    %c0_0 = arith.constant 0 : index
    %0 = vector.load %arg1[%c0, %c0_0] : memref<16x32xf32, #tpu.memory_space<vmem>>, vector<16x32xf32>
    %c0_1 = arith.constant 0 : index
    %c0_2 = arith.constant 0 : index
    %1 = vector.load %arg3[%c0_1, %c0_2] : memref<32x320xf32, #tpu.memory_space<vmem>>, vector<32x320xf32>
    %cst = arith.constant dense<0.000000e+00> : vector<16x320xf32>
    %2 = tpu.matmul %0, %1, %cst {dimension_numbers = #tpu.dot_dimension_numbers<[1], [0], [0], [1], [0, 0, 1, 1], [], []>} : vector<16x32xf32>, vector<32x320xf32>, vector<16x320xf32> -> vector<16x320xf32>
    %c0_3 = arith.constant 0 : index
    %c0_4 = arith.constant 0 : index
    %3 = vector.load %arg2[%c0_3, %c0_4] : memref<16x128xf32, #tpu.memory_space<vmem>>, vector<16x128xf32>
    %c0_5 = arith.constant 0 : index
    %c0_6 = arith.constant 0 : index
    %4 = vector.load %arg4[%c0_5, %c0_6] : memref<128x320xf32, #tpu.memory_space<vmem>>, vector<128x320xf32>
    %cst_7 = arith.constant dense<0.000000e+00> : vector<16x320xf32>
    %5 = tpu.matmul %3, %4, %cst_7 {dimension_numbers = #tpu.dot_dimension_numbers<[1], [0], [0], [1], [0, 0, 1, 1], [], []>} : vector<16x128xf32>, vector<128x320xf32>, vector<16x320xf32> -> vector<16x320xf32>
    %6 = arith.addf %2, %5 : vector<16x320xf32>
    %c0_8 = arith.constant 0 : index
    %c0_9 = arith.constant 0 : index
    %7 = vector.load %arg5[%c0_8, %c0_9] : memref<1x320xf32, #tpu.memory_space<vmem>>, vector<1x320xf32>
    %8 = vector.broadcast %7 : vector<1x320xf32> to vector<16x320xf32>
    %9 = arith.addf %6, %8 : vector<16x320xf32>
    %cst_10 = arith.constant 0.000000e+00 : f32
    %10 = vector.broadcast %cst_10 : f32 to vector<16x320xf32>
    %11 = arith.maximumf %9, %10 : vector<16x320xf32>
    %c0_11 = arith.constant 0 : index
    %c0_12 = arith.constant 0 : index
    %12 = vector.load %arg6[%c0_11, %c0_12] : memref<320x160xf32, #tpu.memory_space<vmem>>, vector<320x160xf32>
    %cst_13 = arith.constant dense<0.000000e+00> : vector<16x160xf32>
    %13 = tpu.matmul %11, %12, %cst_13 {dimension_numbers = #tpu.dot_dimension_numbers<[1], [0], [0], [1], [0, 0, 1, 1], [], []>} : vector<16x320xf32>, vector<320x160xf32>, vector<16x160xf32> -> vector<16x160xf32>
    %c0_14 = arith.constant 0 : index
    %c0_15 = arith.constant 0 : index
    %14 = vector.load %arg7[%c0_14, %c0_15] : memref<1x160xf32, #tpu.memory_space<vmem>>, vector<1x160xf32>
    %15 = vector.broadcast %14 : vector<1x160xf32> to vector<16x160xf32>
    %16 = arith.addf %13, %15 : vector<16x160xf32>
    %c0_16 = arith.constant 0 : index
    %c0_17 = arith.constant 0 : index
    %17 = vector.load %arg8[%c0_16, %c0_17] : memref<160x64xf32, #tpu.memory_space<vmem>>, vector<160x64xf32>
    %cst_18 = arith.constant dense<0.000000e+00> : vector<16x64xf32>
    %18 = tpu.matmul %16, %17, %cst_18 {dimension_numbers = #tpu.dot_dimension_numbers<[1], [0], [0], [1], [0, 0, 1, 1], [], []>} : vector<16x160xf32>, vector<160x64xf32>, vector<16x64xf32> -> vector<16x64xf32>
    %c0_19 = arith.constant 0 : index
    %c0_20 = arith.constant 0 : index
    %19 = vector.load %arg9[%c0_19, %c0_20] : memref<1x64xf32, #tpu.memory_space<vmem>>, vector<1x64xf32>
    %20 = vector.broadcast %19 : vector<1x64xf32> to vector<16x64xf32>
    %21 = arith.addf %18, %20 : vector<16x64xf32>
    %cst_21 = arith.constant 0.000000e+00 : f32
    %22 = vector.broadcast %cst_21 : f32 to vector<16x64xf32>
    %23 = arith.maximumf %21, %22 : vector<16x64xf32>
    %c0_22 = arith.constant 0 : index
    %c0_23 = arith.constant 0 : index
    %24 = vector.load %arg10[%c0_22, %c0_23] : memref<64x128xf32, #tpu.memory_space<vmem>>, vector<64x128xf32>
    %cst_24 = arith.constant dense<0.000000e+00> : vector<16x128xf32>
    %25 = tpu.matmul %23, %24, %cst_24 {dimension_numbers = #tpu.dot_dimension_numbers<[1], [0], [0], [1], [0, 0, 1, 1], [], []>} : vector<16x64xf32>, vector<64x128xf32>, vector<16x128xf32> -> vector<16x128xf32>
    %c0_25 = arith.constant 0 : index
    %c0_26 = arith.constant 0 : index
    %26 = vector.load %arg11[%c0_25, %c0_26] : memref<1x128xf32, #tpu.memory_space<vmem>>, vector<1x128xf32>
    %27 = vector.broadcast %26 : vector<1x128xf32> to vector<16x128xf32>
    %28 = arith.addf %25, %27 : vector<16x128xf32>
    %c0_27 = arith.constant 0 : index
    %c0_28 = arith.constant 0 : index
    %29 = vector.load %arg12[%c0_27, %c0_28] : memref<16x128xf32, #tpu.memory_space<vmem>>, vector<16x128xf32>
    tpu.vector_store %arg12[%c0_27, %c0_28], %28 {strides = array<i32>} : memref<16x128xf32, #tpu.memory_space<vmem>>, vector<16x128xf32>,
    return
  }
  func.func @transform_0(%arg0: i32) -> (i32, i32) {
    %c0_i32 = arith.constant 0 : i32
    %c0_i32_0 = arith.constant 0 : i32
    return %arg0, %c0_i32 : i32, i32
  }
  func.func @transform_1(%arg0: i32) -> (i32, i32) {
    %c0_i32 = arith.constant 0 : i32
    %c0_i32_0 = arith.constant 0 : i32
    return %arg0, %c0_i32 : i32, i32
  }
  func.func @transform_2(%arg0: i32) -> (i32, i32) {
    %c0_i32 = arith.constant 0 : i32
    %c0_i32_0 = arith.constant 0 : i32
    %c0_i32_1 = arith.constant 0 : i32
    return %c0_i32, %c0_i32_0 : i32, i32
  }
  func.func @transform_3(%arg0: i32) -> (i32, i32) {
    %c0_i32 = arith.constant 0 : i32
    %c0_i32_0 = arith.constant 0 : i32
    %c0_i32_1 = arith.constant 0 : i32
    return %c0_i32, %c0_i32_0 : i32, i32
  }
  func.func @transform_4(%arg0: i32) -> (i32, i32) {
    %c0_i32 = arith.constant 0 : i32
    %c0_i32_0 = arith.constant 0 : i32
    %c0_i32_1 = arith.constant 0 : i32
    return %c0_i32, %c0_i32_0 : i32, i32
  }
  func.func @transform_5(%arg0: i32) -> (i32, i32) {
    %c0_i32 = arith.constant 0 : i32
    %c0_i32_0 = arith.constant 0 : i32
    %c0_i32_1 = arith.constant 0 : i32
    return %c0_i32, %c0_i32_0 : i32, i32
  }
  func.func @transform_6(%arg0: i32) -> (i32, i32) {
    %c0_i32 = arith.constant 0 : i32
    %c0_i32_0 = arith.constant 0 : i32
    %c0_i32_1 = arith.constant 0 : i32
    return %c0_i32, %c0_i32_0 : i32, i32
  }
  func.func @transform_7(%arg0: i32) -> (i32, i32) {
    %c0_i32 = arith.constant 0 : i32
    %c0_i32_0 = arith.constant 0 : i32
    %c0_i32_1 = arith.constant 0 : i32
    return %c0_i32, %c0_i32_0 : i32, i32
  }
  func.func @transform_8(%arg0: i32) -> (i32, i32) {
    %c0_i32 = arith.constant 0 : i32
    %c0_i32_0 = arith.constant 0 : i32
    %c0_i32_1 = arith.constant 0 : i32
    return %c0_i32, %c0_i32_0 : i32, i32
  }
  func.func @transform_9(%arg0: i32) -> (i32, i32) {
    %c0_i32 = arith.constant 0 : i32
    %c0_i32_0 = arith.constant 0 : i32
    %c0_i32_1 = arith.constant 0 : i32
    return %c0_i32, %c0_i32_0 : i32, i32
  }
  func.func @transform_10(%arg0: i32) -> (i32, i32) {
    %c0_i32 = arith.constant 0 : i32
    %c0_i32_0 = arith.constant 0 : i32
    %c0_i32_1 = arith.constant 0 : i32
    return %c0_i32, %c0_i32_0 : i32, i32
  }
  func.func @transform_11(%arg0: i32) -> (i32, i32) {
    %c0_i32 = arith.constant 0 : i32
    %c0_i32_0 = arith.constant 0 : i32
    return %arg0, %c0_i32 : i32, i32
  }
}

</mosaic_0001>

<llo_original>
// kernel: tpu_custom_call.1
$region0: #{tpu_custom_call.1}
  #allocation0 [shape = 'u32[]', space=smem, size = 0x4, offset = 0x4, fixed_abs, tag = 'smem constant byte address 0x4 - core index']
  #allocation1 [shape = 'u32[72,128]{1,0:T(1,128)}', space=vmem, size = 0x9000, scoped, tag = 'internal scratch']
  %s0 = inlined_call_operand.vmem [shape: f32[16,32], index: 0, kind: input, shape index: {}]
  %s1 = inlined_call_operand.vmem [shape: f32[16,128], index: 1, kind: input, shape index: {}]
  %s2 = inlined_call_operand.vmem [shape: f32[32,320], index: 2, kind: input, shape index: {}]
  %s3 = inlined_call_operand.vmem [shape: f32[128,320], index: 3, kind: input, shape index: {}]
  %s4 = inlined_call_operand.vmem [shape: f32[1,320], index: 4, kind: input, shape index: {}]
  %s5 = inlined_call_operand.vmem [shape: f32[320,160], index: 5, kind: input, shape index: {}]
  %s6 = inlined_call_operand.vmem [shape: f32[1,160], index: 6, kind: input, shape index: {}]
  %s7 = inlined_call_operand.vmem [shape: f32[160,64], index: 7, kind: input, shape index: {}]
  %s8 = inlined_call_operand.vmem [shape: f32[1,64], index: 8, kind: input, shape index: {}]
  %s9 = inlined_call_operand.vmem [shape: f32[64,128], index: 9, kind: input, shape index: {}]
  %s10 = inlined_call_operand.vmem [shape: f32[1,128], index: 10, kind: input, shape index: {}]
  %s11 = inlined_call_operand.hbm [shape: f32[16,128], index: 11, kind: output, shape index: {}]
  %s12 = sld [smem:[#allocation0]]
  $region54: #{tpu_custom_call.1} parent=0
    _
  %s14 = ssub.s32 1, %s12
  %s15 = scalar_select 0, %s14, %s12
  $region1: #{tpu_custom_call.1} parent=0
    #allocation2 [shape = 'u8[8192]{0}', space=vmem, size = 0x2000, scoped, tag = 'output window, operand 0, single buffered']
    #allocation3 [shape = 's32[1]{0}', space=sflag, size = 0x4, scoped, tag = 'scoped memory for tpu_custom_call.1']
    %16 = vsyncpa [#allocation3], 0
    // Predicated region
    $region2: #{tpu_custom_call.1} parent=1 // pred_check
      _
    $region3: #{tpu_custom_call.1} parent=1 // pred_check_branch
      %18 = sbr.rel (0) target = $region5
    $region4: #{tpu_custom_call.1} parent=1 // pred_region
      _
    $region5: #{tpu_custom_call.1} parent=1 // pred_fallthru
      _
    // Predicated region
    $region6: #{tpu_custom_call.1} parent=1 // pred_check
      _
    $region7: #{tpu_custom_call.1} parent=1 // pred_check_branch
      %20 = sbr.rel (0) target = $region9
    $region8: #{tpu_custom_call.1} parent=1 // pred_region
      _
    $region9: #{tpu_custom_call.1} parent=1 // pred_fallthru
      _
    // Predicated region
    $region10: #{tpu_custom_call.1} parent=1 // pred_check
      _
    $region11: #{tpu_custom_call.1} parent=1 // pred_check_branch
      %22 = sbr.rel (0) target = $region13
    $region12: #{tpu_custom_call.1} parent=1 // pred_region
      _
    $region13: #{tpu_custom_call.1} parent=1 // pred_fallthru
      _
    // Predicated region
    $region14: #{tpu_custom_call.1} parent=1 // pred_check
      _
    $region15: #{tpu_custom_call.1} parent=1 // pred_check_branch
      %24 = sbr.rel (0) target = $region17
    $region16: #{tpu_custom_call.1} parent=1 // pred_region
      _
    $region17: #{tpu_custom_call.1} parent=1 // pred_fallthru
      _
    // Predicated region
    $region18: #{tpu_custom_call.1} parent=1 // pred_check
      _
    $region19: #{tpu_custom_call.1} parent=1 // pred_check_branch
      %26 = sbr.rel (0) target = $region21
    $region20: #{tpu_custom_call.1} parent=1 // pred_region
      _
    $region21: #{tpu_custom_call.1} parent=1 // pred_fallthru
      _
    // Predicated region
    $region22: #{tpu_custom_call.1} parent=1 // pred_check
      _
    $region23: #{tpu_custom_call.1} parent=1 // pred_check_branch
      %28 = sbr.rel (0) target = $region25
    $region24: #{tpu_custom_call.1} parent=1 // pred_region
      _
    $region25: #{tpu_custom_call.1} parent=1 // pred_fallthru
      _
    // Predicated region
    $region26: #{tpu_custom_call.1} parent=1 // pred_check
      _
    $region27: #{tpu_custom_call.1} parent=1 // pred_check_branch
      %30 = sbr.rel (0) target = $region29
    $region28: #{tpu_custom_call.1} parent=1 // pred_region
      _
    $region29: #{tpu_custom_call.1} parent=1 // pred_fallthru
      _
    // Predicated region
    $region30: #{tpu_custom_call.1} parent=1 // pred_check
      _
    $region31: #{tpu_custom_call.1} parent=1 // pred_check_branch
      %32 = sbr.rel (0) target = $region33
    $region32: #{tpu_custom_call.1} parent=1 // pred_region
      _
    $region33: #{tpu_custom_call.1} parent=1 // pred_fallthru
      _
    // Predicated region
    $region34: #{tpu_custom_call.1} parent=1 // pred_check
      _
    $region35: #{tpu_custom_call.1} parent=1 // pred_check_branch
      %34 = sbr.rel (0) target = $region37
    $region36: #{tpu_custom_call.1} parent=1 // pred_region
      _
    $region37: #{tpu_custom_call.1} parent=1 // pred_fallthru
      _
    // Predicated region
    $region38: #{tpu_custom_call.1} parent=1 // pred_check
      _
    $region39: #{tpu_custom_call.1} parent=1 // pred_check_branch
      %36 = sbr.rel (0) target = $region41
    $region40: #{tpu_custom_call.1} parent=1 // pred_region
      _
    $region41: #{tpu_custom_call.1} parent=1 // pred_fallthru
      _
    // Predicated region
    $region42: #{tpu_custom_call.1} parent=1 // pred_check
      _
    $region43: #{tpu_custom_call.1} parent=1 // pred_check_branch
      %38 = sbr.rel (0) target = $region45
    $region44: #{tpu_custom_call.1} parent=1 // pred_region
      _
    $region45: #{tpu_custom_call.1} parent=1 // pred_fallthru
      _
    %v39 = vld [vmem:[%s0] sm:$0xff]
    %v40 = vld [vmem:[%s0 + $0x8] sm:$0xff]
    %v41 = vld [vmem:[%s2] sm:$0xff]
    %v42 = vld [vmem:[%s2 + $0x8] sm:$0xff]
    %v43 = vld [vmem:[%s2 + $0x10] sm:$0xff]
    %v44 = vld [vmem:[%s2 + $0x18] sm:$0xff]
    %v45 = vld [vmem:[%s2 + $0x20] sm:$0xff]
    %v46 = vld [vmem:[%s2 + $0x28] sm:$0xff]
    %v47 = vld [vmem:[%s2 + $0x30] sm:$0xff]
    %v48 = vld [vmem:[%s2 + $0x38] sm:$0xff]
    %v49 = vld [vmem:[%s2 + $0x40] sm:$0xff]
    %v50 = vld [vmem:[%s2 + $0x48] sm:$0xff]
    %v51 = vld [vmem:[%s2 + $0x50] sm:$0xff]
    %v52 = vld [vmem:[%s2 + $0x58] sm:$0xff]
    %v53 = vld [vmem:[%s1] sm:$0xff]
    %v54 = vld [vmem:[%s1 + $0x8] sm:$0xff]
    %v55 = vld [vmem:[%s3] sm:$0xff]
    %v56 = vld [vmem:[%s3 + $0x8] sm:$0xff]
    %v57 = vld [vmem:[%s3 + $0x10] sm:$0xff]
    %v58 = vld [vmem:[%s3 + $0x18] sm:$0xff]
    %v59 = vld [vmem:[%s3 + $0x20] sm:$0xff]
    %v60 = vld [vmem:[%s3 + $0x28] sm:$0xff]
    %v61 = vld [vmem:[%s3 + $0x30] sm:$0xff]
    %v62 = vld [vmem:[%s3 + $0x38] sm:$0xff]
    %v63 = vld [vmem:[%s3 + $0x40] sm:$0xff]
    %v64 = vld [vmem:[%s3 + $0x48] sm:$0xff]
    %v65 = vld [vmem:[%s3 + $0x50] sm:$0xff]
    %v66 = vld [vmem:[%s3 + $0x58] sm:$0xff]
    %v67 = vld [vmem:[%s3 + $0x60] sm:$0xff]
    %v68 = vld [vmem:[%s3 + $0x68] sm:$0xff]
    %v69 = vld [vmem:[%s3 + $0x70] sm:$0xff]
    %v70 = vld [vmem:[%s3 + $0x78] sm:$0xff]
    %v71 = vld [vmem:[%s3 + $0x80] sm:$0xff]
    %v72 = vld [vmem:[%s3 + $0x88] sm:$0xff]
    %v73 = vld [vmem:[%s3 + $0x90] sm:$0xff]
    %v74 = vld [vmem:[%s3 + $0x98] sm:$0xff]
    %v75 = vld [vmem:[%s3 + $0xa0] sm:$0xff]
    %v76 = vld [vmem:[%s3 + $0xa8] sm:$0xff]
    %v77 = vld [vmem:[%s3 + $0xb0] sm:$0xff]
    %v78 = vld [vmem:[%s3 + $0xb8] sm:$0xff]
    %v79 = vld [vmem:[%s3 + $0xc0] sm:$0xff]
    %v80 = vld [vmem:[%s3 + $0xc8] sm:$0xff]
    %v81 = vld [vmem:[%s3 + $0xd0] sm:$0xff]
    %v82 = vld [vmem:[%s3 + $0xd8] sm:$0xff]
    %v83 = vld [vmem:[%s3 + $0xe0] sm:$0xff]
    %v84 = vld [vmem:[%s3 + $0xe8] sm:$0xff]
    %v85 = vld [vmem:[%s3 + $0xf0] sm:$0xff]
    %v86 = vld [vmem:[%s3 + $0xf8] sm:$0xff]
    %v87 = vld [vmem:[%s3 + $0x100] sm:$0xff]
    %v88 = vld [vmem:[%s3 + $0x108] sm:$0xff]
    %v89 = vld [vmem:[%s3 + $0x110] sm:$0xff]
    %v90 = vld [vmem:[%s3 + $0x118] sm:$0xff]
    %v91 = vld [vmem:[%s3 + $0x120] sm:$0xff]
    %v92 = vld [vmem:[%s3 + $0x128] sm:$0xff]
    %v93 = vld [vmem:[%s3 + $0x130] sm:$0xff]
    %v94 = vld [vmem:[%s3 + $0x138] sm:$0xff]
    %v95 = vld [vmem:[%s3 + $0x140] sm:$0xff]
    %v96 = vld [vmem:[%s3 + $0x148] sm:$0xff]
    %v97 = vld [vmem:[%s3 + $0x150] sm:$0xff]
    %v98 = vld [vmem:[%s3 + $0x158] sm:$0xff]
    %v99 = vld [vmem:[%s3 + $0x160] sm:$0xff]
    %v100 = vld [vmem:[%s3 + $0x168] sm:$0xff]
    %v101 = vld [vmem:[%s3 + $0x170] sm:$0xff]
    %v102 = vld [vmem:[%s3 + $0x178] sm:$0xff]
    %103 = vmatpush.msra.mxu0 %v100
    %104 = vmatpush.msra.mxu0 %v97
    %105 = vmatpush.msra.mxu0 %v94
    %106 = vmatpush.msra.mxu0 %v91
    %107 = vmatpush.msra.mxu0 %v88
    %108 = vmatpush.msra.mxu0 %v85
    %109 = vmatpush.msra.mxu0 %v82
    %110 = vmatpush.msra.mxu0 %v79
    %111 = vmatpush.msra.mxu0 %v76
    %112 = vmatpush.msra.mxu0 %v73
    %113 = vmatpush.msra.mxu0 %v70
    %114 = vmatpush.msra.mxu0 %v67
    %115 = vmatpush.msra.mxu0 %v64
    %116 = vmatpush.msra.mxu0 %v61
    %117 = vmatpush.msra.mxu0 %v58
    %118 = vmatpush.msra.mxu0 %v55
    %119 = vmatmul.f32.gmra.mxu0 %v53
    %v120 = vpop.f32.mrf.mxu0
    %v121 = vadd.f32 0.0, %v120
    %122 = vmatmul.f32.gmra.mxu0 %v54
    %v123 = vpop.f32.mrf.mxu0
    %v124 = vadd.f32 0.0, %v123
    %125 = vdwg.mxu0
    %126 = vmatpush.msra.mxu0 %v101
    %127 = vmatpush.msra.mxu0 %v98
    %128 = vmatpush.msra.mxu0 %v95
    %129 = vmatpush.msra.mxu0 %v92
    %130 = vmatpush.msra.mxu0 %v89
    %131 = vmatpush.msra.mxu0 %v86
    %132 = vmatpush.msra.mxu0 %v83
    %133 = vmatpush.msra.mxu0 %v80
    %134 = vmatpush.msra.mxu0 %v77
    %135 = vmatpush.msra.mxu0 %v74
    %136 = vmatpush.msra.mxu0 %v71
    %137 = vmatpush.msra.mxu0 %v68
    %138 = vmatpush.msra.mxu0 %v65
    %139 = vmatpush.msra.mxu0 %v62
    %140 = vmatpush.msra.mxu0 %v59
    %141 = vmatpush.msra.mxu0 %v56
    %142 = vmatmul.f32.gmra.mxu0 %v53
    %v143 = vpop.f32.mrf.mxu0
    %v144 = vadd.f32 0.0, %v143
    %145 = vmatmul.f32.gmra.mxu0 %v54
    %v146 = vpop.f32.mrf.mxu0
    %v147 = vadd.f32 0.0, %v146
    %148 = vdwg.mxu0
    %149 = vmatpush.msra.mxu0 %v102
    %150 = vmatpush.msra.mxu0 %v99
    %151 = vmatpush.msra.mxu0 %v96
    %152 = vmatpush.msra.mxu0 %v93
    %153 = vmatpush.msra.mxu0 %v90
    %154 = vmatpush.msra.mxu0 %v87
    %155 = vmatpush.msra.mxu0 %v84
    %156 = vmatpush.msra.mxu0 %v81
    %157 = vmatpush.msra.mxu0 %v78
    %158 = vmatpush.msra.mxu0 %v75
    %159 = vmatpush.msra.mxu0 %v72
    %160 = vmatpush.msra.mxu0 %v69
    %161 = vmatpush.msra.mxu0 %v66
    %162 = vmatpush.msra.mxu0 %v63
    %163 = vmatpush.msra.mxu0 %v60
    %164 = vmatpush.msra.mxu0 %v57
    %165 = vmatmul.f32.gmra.mxu0 %v53
    %v166 = vpop.f32.mrf.mxu0
    %v167 = vadd.f32 0.0, %v166
    %168 = vmatmul.f32.gmra.mxu0 %v54
    %v169 = vpop.f32.mrf.mxu0
    %v170 = vadd.f32 0.0, %v169
    %171 = vdwg.mxu0
    %vm172 = vcmask 261120
    %v174 = vsel %vm172, %v39, 0
    %v177 = vsel %vm172, %v40, 0
    %179 = vmatpush.msra.mxu0 0.0
    %180 = vmatpush.msra.mxu0 0.0
    %181 = vmatpush.msra.mxu0 0.0
    %182 = vmatpush.msra.mxu0 0.0
    %183 = vmatpush.msra.mxu0 0.0
    %184 = vmatpush.msra.mxu0 0.0
    %185 = vmatpush.msra.mxu0 0.0
    %186 = vmatpush.msra.mxu0 0.0
    %187 = vmatpush.msra.mxu0 0.0
    %188 = vmatpush.msra.mxu0 0.0
    %189 = vmatpush.msra.mxu0 0.0
    %190 = vmatpush.msra.mxu0 0.0
    %191 = vmatpush.msra.mxu0 %v50
    %192 = vmatpush.msra.mxu0 %v47
    %193 = vmatpush.msra.mxu0 %v44
    %194 = vmatpush.msra.mxu0 %v41
    %195 = vmatmul.f32.gmra.mxu0 %v174
    %v196 = vpop.f32.mrf.mxu0
    %v197 = vadd.f32 %v121, %v196
    %198 = vmatmul.f32.gmra.mxu0 %v177
    %v199 = vpop.f32.mrf.mxu0
    %v200 = vadd.f32 %v124, %v199
    %201 = vdwg.mxu0
    %202 = vmatpush.msra.mxu0 0.0
    %203 = vmatpush.msra.mxu0 0.0
    %204 = vmatpush.msra.mxu0 0.0
    %205 = vmatpush.msra.mxu0 0.0
    %206 = vmatpush.msra.mxu0 0.0
    %207 = vmatpush.msra.mxu0 0.0
    %208 = vmatpush.msra.mxu0 0.0
    %209 = vmatpush.msra.mxu0 0.0
    %210 = vmatpush.msra.mxu0 0.0
    %211 = vmatpush.msra.mxu0 0.0
    %212 = vmatpush.msra.mxu0 0.0
    %213 = vmatpush.msra.mxu0 0.0
    %214 = vmatpush.msra.mxu0 %v51
    %215 = vmatpush.msra.mxu0 %v48
    %216 = vmatpush.msra.mxu0 %v45
    %217 = vmatpush.msra.mxu0 %v42
    %218 = vmatmul.f32.gmra.mxu0 %v174
    %v219 = vpop.f32.mrf.mxu0
    %v220 = vadd.f32 %v144, %v219
    %221 = vmatmul.f32.gmra.mxu0 %v177
    %v222 = vpop.f32.mrf.mxu0
    %v223 = vadd.f32 %v147, %v222
    %224 = vdwg.mxu0
    %225 = vmatpush.msra.mxu0 0.0
    %226 = vmatpush.msra.mxu0 0.0
    %227 = vmatpush.msra.mxu0 0.0
    %228 = vmatpush.msra.mxu0 0.0
    %229 = vmatpush.msra.mxu0 0.0
    %230 = vmatpush.msra.mxu0 0.0
    %231 = vmatpush.msra.mxu0 0.0
    %232 = vmatpush.msra.mxu0 0.0
    %233 = vmatpush.msra.mxu0 0.0
    %234 = vmatpush.msra.mxu0 0.0
    %235 = vmatpush.msra.mxu0 0.0
    %236 = vmatpush.msra.mxu0 0.0
    %237 = vmatpush.msra.mxu0 %v52
    %238 = vmatpush.msra.mxu0 %v49
    %239 = vmatpush.msra.mxu0 %v46
    %240 = vmatpush.msra.mxu0 %v43
    %241 = vmatmul.f32.gmra.mxu0 %v174
    %v242 = vpop.f32.mrf.mxu0
    %v243 = vadd.f32 %v167, %v242
    %244 = vmatmul.f32.gmra.mxu0 %v177
    %v245 = vpop.f32.mrf.mxu0
    %v246 = vadd.f32 %v170, %v245
    %247 = vdwg.mxu0
    %v248 = vld [vmem:[%s4] sm:$0x7]
    %v250 = vperm.slane %v248, 0
    %v251 = vperm.slane %v248, 1
    %v252 = vperm.slane %v248, 2
    %v256 = vadd.f32 %v197, %v250
    %v257 = vadd.f32 %v220, %v251
    %v258 = vadd.f32 %v243, %v252
    %v259 = vadd.f32 %v200, %v250
    %v260 = vadd.f32 %v223, %v251
    %v261 = vadd.f32 %v246, %v252
    %v262 = vmax.f32 %v256, 0.0
    %v263 = vmax.f32 %v257, 0.0
    %v264 = vmax.f32 %v258, 0.0
    %v265 = vmax.f32 %v259, 0.0
    %v266 = vmax.f32 %v260, 0.0
    %v267 = vmax.f32 %v261, 0.0
    %v268 = vld [vmem:[%s5] sm:$0xff]
    %v269 = vld [vmem:[%s5 + $0x8] sm:$0xff]
    %v270 = vld [vmem:[%s5 + $0x10] sm:$0xff]
    %v271 = vld [vmem:[%s5 + $0x18] sm:$0xff]
    %v272 = vld [vmem:[%s5 + $0x20] sm:$0xff]
    %v273 = vld [vmem:[%s5 + $0x28] sm:$0xff]
    %v274 = vld [vmem:[%s5 + $0x30] sm:$0xff]
    %v275 = vld [vmem:[%s5 + $0x38] sm:$0xff]
    %v276 = vld [vmem:[%s5 + $0x40] sm:$0xff]
    %v277 = vld [vmem:[%s5 + $0x48] sm:$0xff]
    %v278 = vld [vmem:[%s5 + $0x50] sm:$0xff]
    %v279 = vld [vmem:[%s5 + $0x58] sm:$0xff]
    %v280 = vld [vmem:[%s5 + $0x60] sm:$0xff]
    %v281 = vld [vmem:[%s5 + $0x68] sm:$0xff]
    %v282 = vld [vmem:[%s5 + $0x70] sm:$0xff]
    %v283 = vld [vmem:[%s5 + $0x78] sm:$0xff]
    %v284 = vld [vmem:[%s5 + $0x80] sm:$0xff]
    %v285 = vld [vmem:[%s5 + $0x88] sm:$0xff]
    %v286 = vld [vmem:[%s5 + $0x90] sm:$0xff]
    %v287 = vld [vmem:[%s5 + $0x98] sm:$0xff]
    %v288 = vld [vmem:[%s5 + $0xa0] sm:$0xff]
    %v289 = vld [vmem:[%s5 + $0xa8] sm:$0xff]
    %v290 = vld [vmem:[%s5 + $0xb0] sm:$0xff]
    %v291 = vld [vmem:[%s5 + $0xb8] sm:$0xff]
    %v292 = vld [vmem:[%s5 + $0xc0] sm:$0xff]
    %v293 = vld [vmem:[%s5 + $0xc8] sm:$0xff]
    %v294 = vld [vmem:[%s5 + $0xd0] sm:$0xff]
    %v295 = vld [vmem:[%s5 + $0xd8] sm:$0xff]
    %v296 = vld [vmem:[%s5 + $0xe0] sm:$0xff]
    %v297 = vld [vmem:[%s5 + $0xe8] sm:$0xff]
    %v298 = vld [vmem:[%s5 + $0xf0] sm:$0xff]
    %v299 = vld [vmem:[%s5 + $0xf8] sm:$0xff]
    %v300 = vld [vmem:[%s5 + $0x100] sm:$0xff]
    %v301 = vld [vmem:[%s5 + $0x108] sm:$0xff]
    %v302 = vld [vmem:[%s5 + $0x110] sm:$0xff]
    %v303 = vld [vmem:[%s5 + $0x118] sm:$0xff]
    %v304 = vld [vmem:[%s5 + $0x120] sm:$0xff]
    %v305 = vld [vmem:[%s5 + $0x128] sm:$0xff]
    %v306 = vld [vmem:[%s5 + $0x130] sm:$0xff]
    %v307 = vld [vmem:[%s5 + $0x138] sm:$0xff]
    %v308 = vld [vmem:[%s5 + $0x140] sm:$0xff]
    %v309 = vld [vmem:[%s5 + $0x148] sm:$0xff]
    %v310 = vld [vmem:[%s5 + $0x150] sm:$0xff]
    %v311 = vld [vmem:[%s5 + $0x158] sm:$0xff]
    %v312 = vld [vmem:[%s5 + $0x160] sm:$0xff]
    %v313 = vld [vmem:[%s5 + $0x168] sm:$0xff]
    %v314 = vld [vmem:[%s5 + $0x170] sm:$0xff]
    %v315 = vld [vmem:[%s5 + $0x178] sm:$0xff]
    %v316 = vld [vmem:[%s5 + $0x180] sm:$0xff]
    %v317 = vld [vmem:[%s5 + $0x188] sm:$0xff]
    %v318 = vld [vmem:[%s5 + $0x190] sm:$0xff]
    %v319 = vld [vmem:[%s5 + $0x198] sm:$0xff]
    %v320 = vld [vmem:[%s5 + $0x1a0] sm:$0xff]
    %v321 = vld [vmem:[%s5 + $0x1a8] sm:$0xff]
    %v322 = vld [vmem:[%s5 + $0x1b0] sm:$0xff]
    %v323 = vld [vmem:[%s5 + $0x1b8] sm:$0xff]
    %v324 = vld [vmem:[%s5 + $0x1c0] sm:$0xff]
    %v325 = vld [vmem:[%s5 + $0x1c8] sm:$0xff]
    %v326 = vld [vmem:[%s5 + $0x1d0] sm:$0xff]
    %v327 = vld [vmem:[%s5 + $0x1d8] sm:$0xff]
    %v328 = vld [vmem:[%s5 + $0x1e0] sm:$0xff]
    %v329 = vld [vmem:[%s5 + $0x1e8] sm:$0xff]
    %v330 = vld [vmem:[%s5 + $0x1f0] sm:$0xff]
    %v331 = vld [vmem:[%s5 + $0x1f8] sm:$0xff]
    %v332 = vld [vmem:[%s5 + $0x200] sm:$0xff]
    %v333 = vld [vmem:[%s5 + $0x208] sm:$0xff]
    %v334 = vld [vmem:[%s5 + $0x210] sm:$0xff]
    %v335 = vld [vmem:[%s5 + $0x218] sm:$0xff]
    %v336 = vld [vmem:[%s5 + $0x220] sm:$0xff]
    %v337 = vld [vmem:[%s5 + $0x228] sm:$0xff]
    %v338 = vld [vmem:[%s5 + $0x230] sm:$0xff]
    %v339 = vld [vmem:[%s5 + $0x238] sm:$0xff]
    %v340 = vld [vmem:[%s5 + $0x240] sm:$0xff]
    %v341 = vld [vmem:[%s5 + $0x248] sm:$0xff]
    %v342 = vld [vmem:[%s5 + $0x250] sm:$0xff]
    %v343 = vld [vmem:[%s5 + $0x258] sm:$0xff]
    %v344 = vld [vmem:[%s5 + $0x260] sm:$0xff]
    %v345 = vld [vmem:[%s5 + $0x268] sm:$0xff]
    %v346 = vld [vmem:[%s5 + $0x270] sm:$0xff]
    %v347 = vld [vmem:[%s5 + $0x278] sm:$0xff]
    %v348 = vld [vmem:[%s6] sm:$0x3]
    %v350 = vperm.slane %v348, 0
    %v351 = vperm.slane %v348, 1
    %vm354 = vcmask 523264
    %v356 = vsel %vm354, %v264, 0
    %v359 = vsel %vm354, %v267, 0
    %361 = vmatpush.msra.mxu0 %v298
    %362 = vmatpush.msra.mxu0 %v296
    %363 = vmatpush.msra.mxu0 %v294
    %364 = vmatpush.msra.mxu0 %v292
    %365 = vmatpush.msra.mxu0 %v290
    %366 = vmatpush.msra.mxu0 %v288
    %367 = vmatpush.msra.mxu0 %v286
    %368 = vmatpush.msra.mxu0 %v284
    %369 = vmatpush.msra.mxu0 %v282
    %370 = vmatpush.msra.mxu0 %v280
    %371 = vmatpush.msra.mxu0 %v278
    %372 = vmatpush.msra.mxu0 %v276
    %373 = vmatpush.msra.mxu0 %v274
    %374 = vmatpush.msra.mxu0 %v272
    %375 = vmatpush.msra.mxu0 %v270
    %376 = vmatpush.msra.mxu0 %v268
    %377 = vmatmul.f32.gmra.mxu0 %v262
    %v378 = vpop.f32.mrf.mxu0
    %v379 = vadd.f32 %v350, %v378
    %380 = vmatmul.f32.gmra.mxu0 %v265
    %v381 = vpop.f32.mrf.mxu0
    %v382 = vadd.f32 %v350, %v381
    %383 = vdwg.mxu0
    %384 = vmatpush.msra.mxu0 %v330
    %385 = vmatpush.msra.mxu0 %v328
    %386 = vmatpush.msra.mxu0 %v326
    %387 = vmatpush.msra.mxu0 %v324
    %388 = vmatpush.msra.mxu0 %v322
    %389 = vmatpush.msra.mxu0 %v320
    %390 = vmatpush.msra.mxu0 %v318
    %391 = vmatpush.msra.mxu0 %v316
    %392 = vmatpush.msra.mxu0 %v314
    %393 = vmatpush.msra.mxu0 %v312
    %394 = vmatpush.msra.mxu0 %v310
    %395 = vmatpush.msra.mxu0 %v308
    %396 = vmatpush.msra.mxu0 %v306
    %397 = vmatpush.msra.mxu0 %v304
    %398 = vmatpush.msra.mxu0 %v302
    %399 = vmatpush.msra.mxu0 %v300
    %400 = vmatmul.f32.gmra.mxu0 %v263
    %v401 = vpop.f32.mrf.mxu0
    %v402 = vadd.f32 %v379, %v401
    %403 = vmatmul.f32.gmra.mxu0 %v266
    %v404 = vpop.f32.mrf.mxu0
    %v405 = vadd.f32 %v382, %v404
    %406 = vdwg.mxu0
    %407 = vmatpush.msra.mxu0 0.0
    %408 = vmatpush.msra.mxu0 0.0
    %409 = vmatpush.msra.mxu0 0.0
    %410 = vmatpush.msra.mxu0 0.0
    %411 = vmatpush.msra.mxu0 0.0
    %412 = vmatpush.msra.mxu0 0.0
    %413 = vmatpush.msra.mxu0 0.0
    %414 = vmatpush.msra.mxu0 0.0
    %415 = vmatpush.msra.mxu0 %v346
    %416 = vmatpush.msra.mxu0 %v344
    %417 = vmatpush.msra.mxu0 %v342
    %418 = vmatpush.msra.mxu0 %v340
    %419 = vmatpush.msra.mxu0 %v338
    %420 = vmatpush.msra.mxu0 %v336
    %421 = vmatpush.msra.mxu0 %v334
    %422 = vmatpush.msra.mxu0 %v332
    %423 = vmatmul.f32.gmra.mxu0 %v356
    %v424 = vpop.f32.mrf.mxu0
    %v425 = vadd.f32 %v402, %v424
    %426 = vmatmul.f32.gmra.mxu0 %v359
    %v427 = vpop.f32.mrf.mxu0
    %v428 = vadd.f32 %v405, %v427
    %429 = vdwg.mxu0
    %430 = vmatpush.msra.mxu0 %v299
    %431 = vmatpush.msra.mxu0 %v297
    %432 = vmatpush.msra.mxu0 %v295
    %433 = vmatpush.msra.mxu0 %v293
    %434 = vmatpush.msra.mxu0 %v291
    %435 = vmatpush.msra.mxu0 %v289
    %436 = vmatpush.msra.mxu0 %v287
    %437 = vmatpush.msra.mxu0 %v285
    %438 = vmatpush.msra.mxu0 %v283
    %439 = vmatpush.msra.mxu0 %v281
    %440 = vmatpush.msra.mxu0 %v279
    %441 = vmatpush.msra.mxu0 %v277
    %442 = vmatpush.msra.mxu0 %v275
    %443 = vmatpush.msra.mxu0 %v273
    %444 = vmatpush.msra.mxu0 %v271
    %445 = vmatpush.msra.mxu0 %v269
    %446 = vmatmul.f32.gmra.mxu0 %v262
    %v447 = vpop.f32.mrf.mxu0
    %v448 = vadd.f32 %v351, %v447
    %449 = vmatmul.f32.gmra.mxu0 %v265
    %v450 = vpop.f32.mrf.mxu0
    %v451 = vadd.f32 %v351, %v450
    %452 = vdwg.mxu0
    %453 = vmatpush.msra.mxu0 %v331
    %454 = vmatpush.msra.mxu0 %v329
    %455 = vmatpush.msra.mxu0 %v327
    %456 = vmatpush.msra.mxu0 %v325
    %457 = vmatpush.msra.mxu0 %v323
    %458 = vmatpush.msra.mxu0 %v321
    %459 = vmatpush.msra.mxu0 %v319
    %460 = vmatpush.msra.mxu0 %v317
    %461 = vmatpush.msra.mxu0 %v315
    %462 = vmatpush.msra.mxu0 %v313
    %463 = vmatpush.msra.mxu0 %v311
    %464 = vmatpush.msra.mxu0 %v309
    %465 = vmatpush.msra.mxu0 %v307
    %466 = vmatpush.msra.mxu0 %v305
    %467 = vmatpush.msra.mxu0 %v303
    %468 = vmatpush.msra.mxu0 %v301
    %469 = vmatmul.f32.gmra.mxu0 %v263
    %v470 = vpop.f32.mrf.mxu0
    %v471 = vadd.f32 %v448, %v470
    %472 = vmatmul.f32.gmra.mxu0 %v266
    %v473 = vpop.f32.mrf.mxu0
    %v474 = vadd.f32 %v451, %v473
    %475 = vdwg.mxu0
    %476 = vmatpush.msra.mxu0 0.0
    %477 = vmatpush.msra.mxu0 0.0
    %478 = vmatpush.msra.mxu0 0.0
    %479 = vmatpush.msra.mxu0 0.0
    %480 = vmatpush.msra.mxu0 0.0
    %481 = vmatpush.msra.mxu0 0.0
    %482 = vmatpush.msra.mxu0 0.0
    %483 = vmatpush.msra.mxu0 0.0
    %484 = vmatpush.msra.mxu0 %v347
    %485 = vmatpush.msra.mxu0 %v345
    %486 = vmatpush.msra.mxu0 %v343
    %487 = vmatpush.msra.mxu0 %v341
    %488 = vmatpush.msra.mxu0 %v339
    %489 = vmatpush.msra.mxu0 %v337
    %490 = vmatpush.msra.mxu0 %v335
    %491 = vmatpush.msra.mxu0 %v333
    %492 = vmatmul.f32.gmra.mxu0 %v356
    %v493 = vpop.f32.mrf.mxu0
    %v494 = vadd.f32 %v471, %v493
    %495 = vmatmul.f32.gmra.mxu0 %v359
    %v496 = vpop.f32.mrf.mxu0
    %v497 = vadd.f32 %v474, %v496
    %498 = vdwg.mxu0
    %v499 = vld [vmem:[%s7] sm:$0xff]
    %v500 = vld [vmem:[%s7 + $0x8] sm:$0xff]
    %v501 = vld [vmem:[%s7 + $0x10] sm:$0xff]
    %v502 = vld [vmem:[%s7 + $0x18] sm:$0xff]
    %v503 = vld [vmem:[%s7 + $0x20] sm:$0xff]
    %v504 = vld [vmem:[%s7 + $0x28] sm:$0xff]
    %v505 = vld [vmem:[%s7 + $0x30] sm:$0xff]
    %v506 = vld [vmem:[%s7 + $0x38] sm:$0xff]
    %v507 = vld [vmem:[%s7 + $0x40] sm:$0xff]
    %v508 = vld [vmem:[%s7 + $0x48] sm:$0xff]
    %v509 = vld [vmem:[%s7 + $0x50] sm:$0xff]
    %v510 = vld [vmem:[%s7 + $0x58] sm:$0xff]
    %v511 = vld [vmem:[%s7 + $0x60] sm:$0xff]
    %v512 = vld [vmem:[%s7 + $0x68] sm:$0xff]
    %v513 = vld [vmem:[%s7 + $0x70] sm:$0xff]
    %v514 = vld [vmem:[%s7 + $0x78] sm:$0xff]
    %v515 = vld [vmem:[%s7 + $0x80] sm:$0xff]
    %v516 = vld [vmem:[%s7 + $0x88] sm:$0xff]
    %v517 = vld [vmem:[%s7 + $0x90] sm:$0xff]
    %v518 = vld [vmem:[%s7 + $0x98] sm:$0xff]
    %v519 = vld [vmem:[%s8] sm:$0x1]
    %v521 = vperm.slane %v519, 0
    %v524 = vsel %vm172, %v494, 0
    %v527 = vsel %vm172, %v497, 0
    %529 = vmatpush.msra.mxu0 %v514
    %530 = vmatpush.msra.mxu0 %v513
    %531 = vmatpush.msra.mxu0 %v512
    %532 = vmatpush.msra.mxu0 %v511
    %533 = vmatpush.msra.mxu0 %v510
    %534 = vmatpush.msra.mxu0 %v509
    %535 = vmatpush.msra.mxu0 %v508
    %536 = vmatpush.msra.mxu0 %v507
    %537 = vmatpush.msra.mxu0 %v506
    %538 = vmatpush.msra.mxu0 %v505
    %539 = vmatpush.msra.mxu0 %v504
    %540 = vmatpush.msra.mxu0 %v503
    %541 = vmatpush.msra.mxu0 %v502
    %542 = vmatpush.msra.mxu0 %v501
    %543 = vmatpush.msra.mxu0 %v500
    %544 = vmatpush.msra.mxu0 %v499
    %545 = vmatmul.f32.gmra.mxu0 %v425
    %v546 = vpop.f32.mrf.mxu0
    %v547 = vadd.f32 %v521, %v546
    %548 = vmatmul.f32.gmra.mxu0 %v428
    %v549 = vpop.f32.mrf.mxu0
    %v550 = vadd.f32 %v521, %v549
    %551 = vdwg.mxu0
    %552 = vmatpush.msra.mxu0 0.0
    %553 = vmatpush.msra.mxu0 0.0
    %554 = vmatpush.msra.mxu0 0.0
    %555 = vmatpush.msra.mxu0 0.0
    %556 = vmatpush.msra.mxu0 0.0
    %557 = vmatpush.msra.mxu0 0.0
    %558 = vmatpush.msra.mxu0 0.0
    %559 = vmatpush.msra.mxu0 0.0
    %560 = vmatpush.msra.mxu0 0.0
    %561 = vmatpush.msra.mxu0 0.0
    %562 = vmatpush.msra.mxu0 0.0
    %563 = vmatpush.msra.mxu0 0.0
    %564 = vmatpush.msra.mxu0 %v518
    %565 = vmatpush.msra.mxu0 %v517
    %566 = vmatpush.msra.mxu0 %v516
    %567 = vmatpush.msra.mxu0 %v515
    %568 = vmatmul.f32.gmra.mxu0 %v524
    %v569 = vpop.f32.mrf.mxu0
    %v570 = vadd.f32 %v547, %v569
    %571 = vmatmul.f32.gmra.mxu0 %v527
    %v572 = vpop.f32.mrf.mxu0
    %v573 = vadd.f32 %v550, %v572
    %574 = vdwg.mxu0
    %v575 = vmax.f32 %v570, 0.0
    %v576 = vmax.f32 %v573, 0.0
    %v577 = vld [vmem:[%s9] sm:$0xff]
    %v578 = vld [vmem:[%s9 + $0x8] sm:$0xff]
    %v579 = vld [vmem:[%s9 + $0x10] sm:$0xff]
    %v580 = vld [vmem:[%s9 + $0x18] sm:$0xff]
    %v581 = vld [vmem:[%s9 + $0x20] sm:$0xff]
    %v582 = vld [vmem:[%s9 + $0x28] sm:$0xff]
    %v583 = vld [vmem:[%s9 + $0x30] sm:$0xff]
    %v584 = vld [vmem:[%s9 + $0x38] sm:$0xff]
    %v585 = vld [vmem:[%s10] sm:$0x1]
    %v587 = vperm.slane %v585, 0
    %v590 = vsel %vm354, %v575, 0
    %v593 = vsel %vm354, %v576, 0
    %595 = vmatpush.msra.mxu0 0.0
    %596 = vmatpush.msra.mxu0 0.0
    %597 = vmatpush.msra.mxu0 0.0
    %598 = vmatpush.msra.mxu0 0.0
    %599 = vmatpush.msra.mxu0 0.0
    %600 = vmatpush.msra.mxu0 0.0
    %601 = vmatpush.msra.mxu0 0.0
    %602 = vmatpush.msra.mxu0 0.0
    %603 = vmatpush.msra.mxu0 %v584
    %604 = vmatpush.msra.mxu0 %v583
    %605 = vmatpush.msra.mxu0 %v582
    %606 = vmatpush.msra.mxu0 %v581
    %607 = vmatpush.msra.mxu0 %v580
    %608 = vmatpush.msra.mxu0 %v579
    %609 = vmatpush.msra.mxu0 %v578
    %610 = vmatpush.msra.mxu0 %v577
    %611 = vmatmul.f32.gmra.mxu0 %v590
    %v612 = vpop.f32.mrf.mxu0
    %v613 = vadd.f32 %v587, %v612
    %614 = vmatmul.f32.gmra.mxu0 %v593
    %v615 = vpop.f32.mrf.mxu0
    %v616 = vadd.f32 %v587, %v615
    %617 = vdwg.mxu0
    %618 = vst [vmem:[#allocation2] sm:$0xff] %v613
    %619 = vst [vmem:[#allocation2 + $0x8] sm:$0xff] %v616
    // Predicated region
    $region46: #{tpu_custom_call.1} parent=1 // pred_check
      _
    $region47: #{tpu_custom_call.1} parent=1 // pred_check_branch
      %621 = sbr.rel (0) target = $region49
    $region48: #{tpu_custom_call.1} parent=1 // pred_region
      %623 = vsyncadd [#allocation3], 0
      %s624 = sshll.u32 [#allocation2], 4
      %s625 = int_to_ptr.vmem [resolvable:$true] %s624
      %s626 = sshll.u32 %s11, 4
      %s627 = int_to_ptr.hbm [resolvable:$true] %s626
      %632 = dma.vmem_to_hbm [thread:$0]  %s625, 256, %s627, [#allocation3], 128, 128, 8
    $region49: #{tpu_custom_call.1} parent=1 // pred_fallthru
      _
    // Predicated region
    $region50: #{tpu_custom_call.1} parent=1 // pred_check
      _
    $region51: #{tpu_custom_call.1} parent=1 // pred_check_branch
      %634 = sbr.rel (0) target = $region53
    $region52: #{tpu_custom_call.1} parent=1 // pred_region
      %636 = dma.done [#allocation3], 256
    $region53: #{tpu_custom_call.1} parent=1 // pred_fallthru
      _
    %637 = vsyncpa [#allocation3], 1

</llo_original>
